<compile_context>
chip_gen: v5e
topology: v5e:2x2
jax: 0.10.0
libtpu: 0.0.40
codegen_flags: <defaults>
</compile_context>

<pallas_src>
import functools

import jax
import jax.numpy as jnp
from jax.experimental import pallas as pl
from jax.experimental.pallas import tpu as pltpu


def _attention_kernel(x_ref, w_ref, b_ref, o_ref):
    # x_ref: (TILE_M, D) VMEM tile, w_ref: (1, D) VMEM (resident),
    # b_ref: (1, 1) SMEM scalar, o_ref: (TILE_M, 1) VMEM.
    x = x_ref[...].astype(jnp.float32)
    w = w_ref[...].astype(jnp.float32)
    # Row-wise dot with the single output neuron: VPU multiply + cross-lane
    # (XLU) reduction; both units have slack in this HBM-bound kernel.
    y = jnp.sum(x * w, axis=-1, keepdims=True) + b_ref[0, 0]
    o_ref[...] = y.astype(o_ref.dtype)


def _choose_tile_m(m, d, itemsize, target_tile_bytes, max_rows):
    # Aim for ~target_tile_bytes of input per tile (long DMAs amortize the
    # per-step overhead), cap rows so the (TILE_M, 1) output block stays small,
    # keep a multiple of 8 sublanes, and never exceed M rounded to sublanes.
    rows = target_tile_bytes // max(1, d * itemsize)
    rows = min(rows, max_rows)
    rows = max(8, (rows // 8) * 8)
    m_rounded = ((m + 7) // 8) * 8
    return min(rows, m_rounded)


@functools.partial(jax.jit, static_argnames=("target_tile_bytes", "max_rows"))
def module_attention_forward(x, weight, bias, *, target_tile_bytes=4 << 20,
                             max_rows=8192):
    """Pallas equivalent of: nn.Linear(n_dim, 1)(X).reshape(B, S).

    x:      (B, S, n_dim)
    weight: (1, n_dim)   -- PyTorch nn.Linear weight layout (out, in)
    bias:   (1,)         -- PyTorch nn.Linear bias
    returns (B, S)
    """
    B, S, D = x.shape
    M = B * S
    itemsize = jnp.dtype(x.dtype).itemsize

    tile_m = _choose_tile_m(M, D, itemsize, target_tile_bytes, max_rows)
    num_tiles = pl.cdiv(M, tile_m)

    x2d = x.reshape(M, D)          # metadata-only reshape, no HBM copy
    b2d = bias.reshape(1, 1)

    cost = pl.CostEstimate(
        flops=2 * M * D,
        transcendentals=0,
        bytes_accessed=(M * D + D + M) * itemsize,
    )

    out = pl.pallas_call(
        _attention_kernel,
        out_shape=jax.ShapeDtypeStruct((M, 1), x.dtype),
        grid=(num_tiles,),
        in_specs=[
            pl.BlockSpec((tile_m, D), lambda i: (i, 0)),            # x tile
            pl.BlockSpec((1, D), lambda i: (0, 0)),                 # weight (resident)
            pl.BlockSpec(memory_space=pltpu.MemorySpace.SMEM),      # bias scalar
        ],
        out_specs=pl.BlockSpec((tile_m, 1), lambda i: (i, 0)),
        compiler_params=pltpu.CompilerParams(
            dimension_semantics=("parallel",),
            vmem_limit_bytes=32 << 20,
        ),
        cost_estimate=cost,
    )(x2d, weight, b2d)

    return out.reshape(B, S)


if __name__ == "__main__":
    # Small shapes consistent with the module: X of shape (B, S, n_dim).
    B, S, n_dim = 2, 8, 32

    key = jax.random.PRNGKey(0)
    kx, kw, kb = jax.random.split(key, 3)

    x = jax.random.normal(kx, (B, S, n_dim), dtype=jnp.float32)

    # Deterministic parameter init (mimics nn.Linear's uniform(-1/sqrt(D), 1/sqrt(D))).
    bound = 1.0 / jnp.sqrt(jnp.float32(n_dim))
    weight = jax.random.uniform(kw, (1, n_dim), minval=-bound, maxval=bound,
                                dtype=jnp.float32)
    bias = jax.random.uniform(kb, (1,), minval=-bound, maxval=bound,
                              dtype=jnp.float32)

    out = module_attention_forward(x, weight, bias)
    out = jax.block_until_ready(out)

    # Reference check against plain JAX (same semantics as the PyTorch module).
    ref = (x.reshape(B * S, n_dim) @ weight.T + bias).reshape(B, S)
    assert out.shape == (B, S)
    assert jnp.allclose(out, ref, atol=1e-5, rtol=1e-5)

    print("KERNEL_OK")
</pallas_src>

<mosaic_0001>
module attributes {stable_mosaic.version = 11 : i64} {
  func.func @_attention_kernel(%arg0: i32, %arg1: memref<16x32xf32, #tpu.memory_space<vmem>>, %arg2: memref<1x32xf32, #tpu.memory_space<vmem>>, %arg3: memref<1x1xf32, #tpu.memory_space<smem>>, %arg4: memref<16x1xf32, #tpu.memory_space<vmem>>) attributes {dimension_semantics = [#tpu.dimension_semantics<parallel>], iteration_bounds = array<i64: 1>, scalar_prefetch = 0 : i64, scratch_operands = 0 : i64, tpu.core_type = #tpu.core_type<tc>, window_params = [{transform_indices = @transform_0, window_bounds = array<i64: 16, 32>}, {pipeline_mode = #tpu.pipeline_mode<synchronous>, transform_indices = @transform_1, window_bounds = array<i64: 1, 32>}, {transform_indices = @transform_2, window_bounds = array<i64: 1, 1>}, {transform_indices = @transform_3, window_bounds = array<i64: 16, 1>}]} {
    %c0 = arith.constant 0 : index
    %c0_0 = arith.constant 0 : index
    %0 = vector.load %arg1[%c0, %c0_0] : memref<16x32xf32, #tpu.memory_space<vmem>>, vector<16x32xf32>
    %c0_1 = arith.constant 0 : index
    %c0_2 = arith.constant 0 : index
    %1 = vector.load %arg2[%c0_1, %c0_2] : memref<1x32xf32, #tpu.memory_space<vmem>>, vector<1x32xf32>
    %2 = vector.broadcast %1 : vector<1x32xf32> to vector<16x32xf32>
    %3 = arith.mulf %0, %2 : vector<16x32xf32>
    %cst = arith.constant dense<0.000000e+00> : vector<16xf32>
    %4 = vector.multi_reduction <add>, %3, %cst [1] : vector<16x32xf32> to vector<16xf32>
    %5 = vector.shape_cast %4 : vector<16xf32> to vector<16x1xf32>
    %c0_3 = arith.constant 0 : index
    %c0_4 = arith.constant 0 : index
    %6 = memref.load %arg3[%c0_3, %c0_4] : memref<1x1xf32, #tpu.memory_space<smem>>
    %7 = vector.broadcast %6 : f32 to vector<16x1xf32>
    %8 = arith.addf %5, %7 : vector<16x1xf32>
    %c0_5 = arith.constant 0 : index
    %c0_6 = arith.constant 0 : index
    %9 = vector.load %arg4[%c0_5, %c0_6] : memref<16x1xf32, #tpu.memory_space<vmem>>, vector<16x1xf32>
    tpu.vector_store %arg4[%c0_5, %c0_6], %8 {strides = array<i32>} : memref<16x1xf32, #tpu.memory_space<vmem>>, vector<16x1xf32>,
    return
  }
  func.func @transform_0(%arg0: i32) -> (i32, i32) {
    %c0_i32 = arith.constant 0 : i32
    %c0_i32_0 = arith.constant 0 : i32
    return %arg0, %c0_i32 : i32, i32
  }
  func.func @transform_1(%arg0: i32) -> (i32, i32) {
    %c0_i32 = arith.constant 0 : i32
    %c0_i32_0 = arith.constant 0 : i32
    %c0_i32_1 = arith.constant 0 : i32
    return %c0_i32, %c0_i32_0 : i32, i32
  }
  func.func @transform_2(%arg0: i32) -> (i32, i32) {
    %c0_i32 = arith.constant 0 : i32
    %c0_i32_0 = arith.constant 0 : i32
    %c0_i32_1 = arith.constant 0 : i32
    return %c0_i32, %c0_i32_0 : i32, i32
  }
  func.func @transform_3(%arg0: i32) -> (i32, i32) {
    %c0_i32 = arith.constant 0 : i32
    %c0_i32_0 = arith.constant 0 : i32
    return %arg0, %c0_i32 : i32, i32
  }
}

</mosaic_0001>

<llo_original>
// kernel: module_attention_forward.1
$region0: #{module_attention_forward.1}
  #allocation0 [shape = 'u32[]', space=smem, size = 0x4, offset = 0x4, fixed_abs, tag = 'smem constant byte address 0x4 - core index']
  #allocation1 [shape = 'u32[72,128]{1,0:T(1,128)}', space=vmem, size = 0x9000, scoped, tag = 'internal scratch']
  #allocation2 [shape = 'f32[1,1]{1,0:T(1,128)S(6)}', space=smem, size = 0x200, scoped, tag = 'scoped memory for module_attention_forward.1']
  %s0 = inlined_call_operand.hbm [shape: f32[16,32], index: 0, kind: input, shape index: {}]
  %s1 = inlined_call_operand.vmem [shape: f32[1,32], index: 1, kind: input, shape index: {}]
  %s2 = inlined_call_operand.<no memory space> [shape: f32[1,1], index: 2, kind: input, shape index: {}]
  %s3 = inlined_call_operand.vmem [shape: f32[16,1], index: 3, kind: output, shape index: {}]
  %s4 = sld [smem:[#allocation0]]
  $region26: #{module_attention_forward.1} parent=0
    _
  %s6 = ssub.s32 1, %s4
  %s7 = scalar_select 0, %s6, %s4
  %8 = sst [smem:[#allocation2]] %s2
  $region1: #{module_attention_forward.1} parent=0
    #allocation3 [shape = 'u8[8192]{0}', space=vmem, size = 0x2000, scoped, tag = 'input window, operand 0, single buffered']
    #allocation4 [shape = 's32[1]{0}', space=sflag, size = 0x4, scoped, tag = 'scoped memory for module_attention_forward.1']
    %9 = vsyncpa [#allocation4], 0
    // Predicated region
    $region2: #{module_attention_forward.1} parent=1 // pred_check
      _
    $region3: #{module_attention_forward.1} parent=1 // pred_check_branch
      %11 = sbr.rel (0) target = $region5
    $region4: #{module_attention_forward.1} parent=1 // pred_region
      %13 = vsyncadd [#allocation4], 0
      %s14 = sshll.u32 %s0, 4
      %s15 = int_to_ptr.hbm [resolvable:$true] %s14
      %s16 = sshll.u32 [#allocation3], 4
      %s17 = int_to_ptr.vmem [resolvable:$true] %s16
      %22 = dma.hbm_to_vmem [thread:$0]  %s15, 256, %s17, [#allocation4], 128, 128, 8
    $region5: #{module_attention_forward.1} parent=1 // pred_fallthru
      _
    // Predicated region
    $region6: #{module_attention_forward.1} parent=1 // pred_check
      _
    $region7: #{module_attention_forward.1} parent=1 // pred_check_branch
      %24 = sbr.rel (0) target = $region9
    $region8: #{module_attention_forward.1} parent=1 // pred_region
      _
    $region9: #{module_attention_forward.1} parent=1 // pred_fallthru
      _
    // Predicated region
    $region10: #{module_attention_forward.1} parent=1 // pred_check
      _
    $region11: #{module_attention_forward.1} parent=1 // pred_check_branch
      %26 = sbr.rel (0) target = $region13
    $region12: #{module_attention_forward.1} parent=1 // pred_region
      _
    $region13: #{module_attention_forward.1} parent=1 // pred_fallthru
      _
    // Predicated region
    $region14: #{module_attention_forward.1} parent=1 // pred_check
      _
    $region15: #{module_attention_forward.1} parent=1 // pred_check_branch
      %28 = sbr.rel (0) target = $region17
    $region16: #{module_attention_forward.1} parent=1 // pred_region
      %30 = dma.done [#allocation4], 256
    $region17: #{module_attention_forward.1} parent=1 // pred_fallthru
      _
    %v31 = vld [vmem:[#allocation3] sm:$0xff]
    %v32 = vld [vmem:[#allocation3 + $0x8] sm:$0xff]
    %v33 = vld [vmem:[%s1] sm:$0x1]
    %v35 = vperm.slane %v33, 0
    %v37 = vmul.f32 %v31, %v35
    %v38 = vmul.f32 %v32, %v35
    %vm39 = vcmask 261120
    %v40 = vsel %vm39, %v37, 0.0
    %41 = vadd.xlane.f32.xlu0 %v40
    %v42 = vpop.xlane.xlu0 %41
    %v43 = vsel %vm39, %v38, 0.0
    %44 = vadd.xlane.f32.xlu0 %v43
    %v45 = vpop.xlane.xlu0 %44
    %s46 = sld [smem:[#allocation2]]
    %v47 = vstv %s46
    %v48 = vadd.f32 %v42, %v47
    %v49 = vadd.f32 %v45, %v47
    %vm50 = vcmask 7168
    %51 = vst.msk [vmem:[%s3] sm:$0xff] %vm50, %v48
    %52 = vst.msk [vmem:[%s3 + $0x8] sm:$0xff] %vm50, %v49
    // Predicated region
    $region18: #{module_attention_forward.1} parent=1 // pred_check
      _
    $region19: #{module_attention_forward.1} parent=1 // pred_check_branch
      %54 = sbr.rel (0) target = $region21
    $region20: #{module_attention_forward.1} parent=1 // pred_region
      _
    $region21: #{module_attention_forward.1} parent=1 // pred_fallthru
      _
    // Predicated region
    $region22: #{module_attention_forward.1} parent=1 // pred_check
      _
    $region23: #{module_attention_forward.1} parent=1 // pred_check_branch
      %56 = sbr.rel (0) target = $region25
    $region24: #{module_attention_forward.1} parent=1 // pred_region
      _
    $region25: #{module_attention_forward.1} parent=1 // pred_fallthru
      _
    %57 = vsyncpa [#allocation4], 1

</llo_original>
